<compile_context>
chip_gen: v5e
topology: v5e:2x2
jax: 0.10.0
libtpu: 0.0.40
codegen_flags: <defaults>
</compile_context>

<pallas_src>
import functools
import math

import jax
import jax.numpy as jnp
from jax import lax
from jax.experimental import pallas as pl
from jax.experimental.pallas import tpu as pltpu


def _layernorm(z, gamma, beta, eps=1e-5):
    mu = jnp.mean(z, axis=-1, keepdims=True)
    var = jnp.mean((z - mu) ** 2, axis=-1, keepdims=True)
    return (z - mu) * lax.rsqrt(var + eps) * gamma + beta


def encoder_block_kernel(
        x_ref,        # (B*S, H) f32
        mask_ref,     # (B*S, B*S) f32: 1.0 = may attend, 0.0 = masked
        wqkv_ref,     # (H, 3H) bf16  [Wq*scale | Wk | Wv]
        wo_ref,       # (H, H)  bf16
        w1_ref,       # (H, F)  bf16
        w2_ref,       # (F, H)  bf16
        vec_ref,      # (5, H)  f32: [g1, b1, g2, b2, bf2]
        bf1_ref,      # (1, F)  f32
        out_ref,      # (B*S, H) f32
        o_scratch,    # VMEM (B*S, H) f32: head-concatenated attention output
        *, num_heads):
    x = x_ref[...]                                   # (N, H) f32, N = B*S
    N, H = x.shape
    nh = num_heads
    dh = H // nh

    # ---- fused QKV projection: one MXU push, bf16 operands, f32 accumulate ----
    qkv = jnp.dot(x.astype(jnp.bfloat16), wqkv_ref[...],
                  preferred_element_type=jnp.float32)          # (N, 3H)

    attend = mask_ref[...] > 0.5                                # (N, N) bool

    # ---- per-head attention (static unroll, nh=4); everything stays 2-D ----
    for h in range(nh):
        q_h = qkv[:, h * dh:(h + 1) * dh].astype(jnp.bfloat16)           # (N, dh)
        k_h = qkv[:, H + h * dh:H + (h + 1) * dh].astype(jnp.bfloat16)   # (N, dh)
        v_h = qkv[:, 2 * H + h * dh:2 * H + (h + 1) * dh].astype(jnp.bfloat16)

        # q_h @ k_h^T  (scale already folded into Wq)
        s_h = lax.dot_general(q_h, k_h, (((1,), (1,)), ((), ())),
                              preferred_element_type=jnp.float32)        # (N, N)
        s_h = jnp.where(attend, s_h, -1000000.0)

        # softmax over keys (f32); EUP reciprocal instead of a VALU divide
        m_h = jnp.max(s_h, axis=-1, keepdims=True)
        e_h = jnp.exp(s_h - m_h)
        p_h = e_h * pl.reciprocal(jnp.sum(e_h, axis=-1, keepdims=True),
                                  approx=True)

        o_h = jnp.dot(p_h.astype(jnp.bfloat16), v_h,
                      preferred_element_type=jnp.float32)                # (N, dh)
        # head-concatenation along lanes via a plain sliced ref store
        o_scratch[:, h * dh:(h + 1) * dh] = o_h

    # ---- output projection: single (N,H)@(H,H) dot ----
    attn = jnp.dot(o_scratch[...].astype(jnp.bfloat16), wo_ref[...],
                   preferred_element_type=jnp.float32)                   # (N, H)

    # ---- AddNorm 1 ----
    g1 = vec_ref[0:1, :]
    b1 = vec_ref[1:2, :]
    y = _layernorm(x + attn, g1, b1)

    # ---- position-wise FFN ----
    hdn = jnp.maximum(
        jnp.dot(y.astype(jnp.bfloat16), w1_ref[...],
                preferred_element_type=jnp.float32) + bf1_ref[...], 0.0)
    f = jnp.dot(hdn.astype(jnp.bfloat16), w2_ref[...],
                preferred_element_type=jnp.float32) + vec_ref[4:5, :]    # + bf2

    # ---- AddNorm 2 ----
    g2 = vec_ref[2:3, :]
    b2 = vec_ref[3:4, :]
    out_ref[...] = _layernorm(y + f, g2, b2).astype(out_ref.dtype)


def encoder_block(x, valid_lens, p, num_heads):
    B, S, H = x.shape
    F = p["w1"].shape[0]
    dh = H // num_heads
    N = B * S
    scale = 1.0 / math.sqrt(dh)

    # PyTorch Linear weight is (out, in); the kernel computes y = x @ W^T.
    # Fused QKV slab (H, 3H) with 1/sqrt(dh) folded into the Q columns; bf16.
    wqkv = jnp.concatenate(
        [p["wq"].T * scale, p["wk"].T, p["wv"].T], axis=1).astype(jnp.bfloat16)
    wo = p["wo"].T.astype(jnp.bfloat16)                       # (H, H)
    w1 = p["w1"].T.astype(jnp.bfloat16)                       # (H, F)
    w2 = p["w2"].T.astype(jnp.bfloat16)                       # (F, H)
    vecs = jnp.stack([p["g1"], p["b1"], p["g2"], p["b2"], p["bf2"]],
                     axis=0).astype(jnp.float32)              # (5, H)
    bf1 = p["bf1"].reshape(1, F).astype(jnp.float32)

    # Flattened-token attendability mask: token n may attend key m iff they are
    # in the same batch row AND m's position < valid_lens[batch(m)].
    tok_b = jnp.repeat(jnp.arange(B, dtype=jnp.int32), S)         # (N,)
    pos = jnp.tile(jnp.arange(S, dtype=jnp.int32), B)             # (N,)
    key_valid = pos < valid_lens.astype(jnp.int32)[tok_b]         # (N,)
    mask = (jnp.logical_and(tok_b[:, None] == tok_b[None, :],
                            key_valid[None, :])).astype(jnp.float32)  # (N, N)

    x2d = x.reshape(N, H).astype(jnp.float32)

    out2d = pl.pallas_call(
        functools.partial(encoder_block_kernel, num_heads=num_heads),
        out_shape=jax.ShapeDtypeStruct((N, H), jnp.float32),
        scratch_shapes=[pltpu.VMEM((N, H), jnp.float32)],
    )(x2d, mask, wqkv, wo, w1, w2, vecs, bf1)

    return out2d.reshape(B, S, H)


# ------------------------- pure-JAX reference -------------------------
def encoder_block_ref(x, valid_lens, p, num_heads):
    B, S, H = x.shape
    dh = H // num_heads

    def heads(z, w):
        return (z @ w.T).reshape(B, S, num_heads, dh).transpose(0, 2, 1, 3)

    q, k, v = heads(x, p["wq"]), heads(x, p["wk"]), heads(x, p["wv"])
    s = jnp.einsum("bhqd,bhkd->bhqk", q, k) / math.sqrt(dh)
    mask = (jnp.arange(S)[None, :] < valid_lens[:, None])[:, None, None, :]
    s = jnp.where(mask, s, -1000000.0)
    pr = jax.nn.softmax(s, axis=-1)
    o = jnp.einsum("bhqk,bhkd->bhqd", pr, v)
    attn = o.transpose(0, 2, 1, 3).reshape(B, S, H) @ p["wo"].T

    def ln(z, g, bb):
        mu = z.mean(-1, keepdims=True)
        var = ((z - mu) ** 2).mean(-1, keepdims=True)
        return (z - mu) / jnp.sqrt(var + 1e-5) * g + bb

    y = ln(x + attn, p["g1"], p["b1"])
    f = jax.nn.relu(y @ p["w1"].T + p["bf1"]) @ p["w2"].T + p["bf2"]
    return ln(y + f, p["g2"], p["b2"])


if __name__ == "__main__":
    B, S, H, F, num_heads = 2, 8, 32, 64, 4

    key = jax.random.PRNGKey(0)
    ks = jax.random.split(key, 12)

    def w(k_, shape, scale=0.1):
        return (scale * jax.random.normal(k_, shape)).astype(jnp.float32)

    params = {
        "wq": w(ks[0], (H, H)), "wk": w(ks[1], (H, H)),
        "wv": w(ks[2], (H, H)), "wo": w(ks[3], (H, H)),
        "g1": jnp.ones((H,), jnp.float32), "b1": jnp.zeros((H,), jnp.float32),
        "w1": w(ks[4], (F, H)), "bf1": w(ks[5], (F,)),
        "w2": w(ks[6], (H, F)), "bf2": w(ks[7], (H,)),
        "g2": jnp.ones((H,), jnp.float32), "b2": jnp.zeros((H,), jnp.float32),
    }

    x = jax.random.normal(ks[8], (B, S, H), jnp.float32)
    valid_lens = jnp.array([6, 3], jnp.int32)

    out = jax.block_until_ready(encoder_block(x, valid_lens, params, num_heads))
    ref = encoder_block_ref(x, valid_lens, params, num_heads)

    assert out.shape == (B, S, H)
    # bf16 MXU operands (f32 accumulate) + approx reciprocal -> relaxed tolerance.
    err = float(jnp.max(jnp.abs(out - ref)))
    assert err < 3e-2, err
    print("KERNEL_OK")
</pallas_src>

<mosaic_0001>
module attributes {stable_mosaic.version = 11 : i64} {
  func.func @encoder_block_kernel(%arg0: memref<16x32xf32, #tpu.memory_space<vmem>>, %arg1: memref<16x16xf32, #tpu.memory_space<vmem>>, %arg2: memref<32x96xbf16, #tpu.memory_space<vmem>>, %arg3: memref<32x32xbf16, #tpu.memory_space<vmem>>, %arg4: memref<32x64xbf16, #tpu.memory_space<vmem>>, %arg5: memref<64x32xbf16, #tpu.memory_space<vmem>>, %arg6: memref<5x32xf32, #tpu.memory_space<vmem>>, %arg7: memref<1x64xf32, #tpu.memory_space<vmem>>, %arg8: memref<16x32xf32, #tpu.memory_space<vmem>>, %arg9: memref<16x32xf32, #tpu.memory_space<vmem>>) attributes {dimension_semantics = [], scalar_prefetch = 0 : i64, scratch_operands = 1 : i64, tpu.core_type = #tpu.core_type<tc>} {
    %c0 = arith.constant 0 : index
    %c0_0 = arith.constant 0 : index
    %0 = vector.load %arg0[%c0, %c0_0] : memref<16x32xf32, #tpu.memory_space<vmem>>, vector<16x32xf32>
    %1 = arith.truncf %0 : vector<16x32xf32> to vector<16x32xbf16>
    %c0_1 = arith.constant 0 : index
    %c0_2 = arith.constant 0 : index
    %2 = vector.load %arg2[%c0_1, %c0_2] : memref<32x96xbf16, #tpu.memory_space<vmem>>, vector<32x96xbf16>
    %cst = arith.constant dense<0.000000e+00> : vector<16x96xf32>
    %3 = tpu.matmul %1, %2, %cst {dimension_numbers = #tpu.dot_dimension_numbers<[1], [0], [0], [1], [0, 0, 1, 1], [], []>} : vector<16x32xbf16>, vector<32x96xbf16>, vector<16x96xf32> -> vector<16x96xf32>
    %c0_3 = arith.constant 0 : index
    %c0_4 = arith.constant 0 : index
    %4 = vector.load %arg1[%c0_3, %c0_4] : memref<16x16xf32, #tpu.memory_space<vmem>>, vector<16x16xf32>
    %cst_5 = arith.constant 5.000000e-01 : f32
    %5 = vector.broadcast %cst_5 : f32 to vector<16x16xf32>
    %6 = arith.cmpf ogt, %4, %5 : vector<16x16xf32>
    %7 = vector.extract_strided_slice %3 {offsets = [0, 0], sizes = [16, 8], strides = [1, 1]} : vector<16x96xf32> to vector<16x8xf32>
    %8 = arith.truncf %7 : vector<16x8xf32> to vector<16x8xbf16>
    %9 = vector.extract_strided_slice %3 {offsets = [0, 32], sizes = [16, 8], strides = [1, 1]} : vector<16x96xf32> to vector<16x8xf32>
    %10 = arith.truncf %9 : vector<16x8xf32> to vector<16x8xbf16>
    %11 = vector.extract_strided_slice %3 {offsets = [0, 64], sizes = [16, 8], strides = [1, 1]} : vector<16x96xf32> to vector<16x8xf32>
    %12 = arith.truncf %11 : vector<16x8xf32> to vector<16x8xbf16>
    %cst_6 = arith.constant dense<0.000000e+00> : vector<16x16xf32>
    %13 = tpu.matmul %8, %10, %cst_6 {dimension_numbers = #tpu.dot_dimension_numbers<[1], [1], [0], [0], [0, 0, 1, 0], [], []>} : vector<16x8xbf16>, vector<16x8xbf16>, vector<16x16xf32> -> vector<16x16xf32>
    %cst_7 = arith.constant -1.000000e+06 : f32
    %14 = vector.broadcast %cst_7 : f32 to vector<16x16xf32>
    %15 = arith.select %6, %13, %14 : vector<16x16xi1>, vector<16x16xf32>
    %cst_8 = arith.constant dense<0xFF800000> : vector<16xf32>
    %16 = vector.multi_reduction <maximumf>, %15, %cst_8 [1] : vector<16x16xf32> to vector<16xf32>
    %17 = vector.shape_cast %16 : vector<16xf32> to vector<16x1xf32>
    %18 = vector.broadcast %17 : vector<16x1xf32> to vector<16x16xf32>
    %19 = arith.subf %15, %18 : vector<16x16xf32>
    %20 = math.exp %19 : vector<16x16xf32>
    %cst_9 = arith.constant dense<0.000000e+00> : vector<16xf32>
    %21 = vector.multi_reduction <add>, %20, %cst_9 [1] : vector<16x16xf32> to vector<16xf32>
    %22 = vector.shape_cast %21 : vector<16xf32> to vector<16x1xf32>
    %23 = tpu.reciprocal %22 {approx = true} : vector<16x1xf32> -> vector<16x1xf32>
    %24 = vector.broadcast %23 : vector<16x1xf32> to vector<16x16xf32>
    %25 = arith.mulf %20, %24 : vector<16x16xf32>
    %26 = arith.truncf %25 : vector<16x16xf32> to vector<16x16xbf16>
    %cst_10 = arith.constant dense<0.000000e+00> : vector<16x8xf32>
    %27 = tpu.matmul %26, %12, %cst_10 {dimension_numbers = #tpu.dot_dimension_numbers<[1], [0], [0], [1], [0, 0, 1, 1], [], []>} : vector<16x16xbf16>, vector<16x8xbf16>, vector<16x8xf32> -> vector<16x8xf32>
    %c0_11 = arith.constant 0 : index
    %c0_12 = arith.constant 0 : index
    %28 = vector.load %arg9[%c0_11, %c0_12] : memref<16x32xf32, #tpu.memory_space<vmem>>, vector<16x8xf32>
    tpu.vector_store %arg9[%c0_11, %c0_12], %27 {strides = array<i32>} : memref<16x32xf32, #tpu.memory_space<vmem>>, vector<16x8xf32>,
    %29 = vector.extract_strided_slice %3 {offsets = [0, 8], sizes = [16, 8], strides = [1, 1]} : vector<16x96xf32> to vector<16x8xf32>
    %30 = arith.truncf %29 : vector<16x8xf32> to vector<16x8xbf16>
    %31 = vector.extract_strided_slice %3 {offsets = [0, 40], sizes = [16, 8], strides = [1, 1]} : vector<16x96xf32> to vector<16x8xf32>
    %32 = arith.truncf %31 : vector<16x8xf32> to vector<16x8xbf16>
    %33 = vector.extract_strided_slice %3 {offsets = [0, 72], sizes = [16, 8], strides = [1, 1]} : vector<16x96xf32> to vector<16x8xf32>
    %34 = arith.truncf %33 : vector<16x8xf32> to vector<16x8xbf16>
    %cst_13 = arith.constant dense<0.000000e+00> : vector<16x16xf32>
    %35 = tpu.matmul %30, %32, %cst_13 {dimension_numbers = #tpu.dot_dimension_numbers<[1], [1], [0], [0], [0, 0, 1, 0], [], []>} : vector<16x8xbf16>, vector<16x8xbf16>, vector<16x16xf32> -> vector<16x16xf32>
    %cst_14 = arith.constant -1.000000e+06 : f32
    %36 = vector.broadcast %cst_14 : f32 to vector<16x16xf32>
    %37 = arith.select %6, %35, %36 : vector<16x16xi1>, vector<16x16xf32>
    %cst_15 = arith.constant dense<0xFF800000> : vector<16xf32>
    %38 = vector.multi_reduction <maximumf>, %37, %cst_15 [1] : vector<16x16xf32> to vector<16xf32>
    %39 = vector.shape_cast %38 : vector<16xf32> to vector<16x1xf32>
    %40 = vector.broadcast %39 : vector<16x1xf32> to vector<16x16xf32>
    %41 = arith.subf %37, %40 : vector<16x16xf32>
    %42 = math.exp %41 : vector<16x16xf32>
    %cst_16 = arith.constant dense<0.000000e+00> : vector<16xf32>
    %43 = vector.multi_reduction <add>, %42, %cst_16 [1] : vector<16x16xf32> to vector<16xf32>
    %44 = vector.shape_cast %43 : vector<16xf32> to vector<16x1xf32>
    %45 = tpu.reciprocal %44 {approx = true} : vector<16x1xf32> -> vector<16x1xf32>
    %46 = vector.broadcast %45 : vector<16x1xf32> to vector<16x16xf32>
    %47 = arith.mulf %42, %46 : vector<16x16xf32>
    %48 = arith.truncf %47 : vector<16x16xf32> to vector<16x16xbf16>
    %cst_17 = arith.constant dense<0.000000e+00> : vector<16x8xf32>
    %49 = tpu.matmul %48, %34, %cst_17 {dimension_numbers = #tpu.dot_dimension_numbers<[1], [0], [0], [1], [0, 0, 1, 1], [], []>} : vector<16x16xbf16>, vector<16x8xbf16>, vector<16x8xf32> -> vector<16x8xf32>
    %c0_18 = arith.constant 0 : index
    %c8 = arith.constant 8 : index
    %50 = vector.load %arg9[%c0_18, %c8] : memref<16x32xf32, #tpu.memory_space<vmem>>, vector<16x8xf32>
    tpu.vector_store %arg9[%c0_18, %c8], %49 {strides = array<i32>} : memref<16x32xf32, #tpu.memory_space<vmem>>, vector<16x8xf32>,
    %51 = vector.extract_strided_slice %3 {offsets = [0, 16], sizes = [16, 8], strides = [1, 1]} : vector<16x96xf32> to vector<16x8xf32>
    %52 = arith.truncf %51 : vector<16x8xf32> to vector<16x8xbf16>
    %53 = vector.extract_strided_slice %3 {offsets = [0, 48], sizes = [16, 8], strides = [1, 1]} : vector<16x96xf32> to vector<16x8xf32>
    %54 = arith.truncf %53 : vector<16x8xf32> to vector<16x8xbf16>
    %55 = vector.extract_strided_slice %3 {offsets = [0, 80], sizes = [16, 8], strides = [1, 1]} : vector<16x96xf32> to vector<16x8xf32>
    %56 = arith.truncf %55 : vector<16x8xf32> to vector<16x8xbf16>
    %cst_19 = arith.constant dense<0.000000e+00> : vector<16x16xf32>
    %57 = tpu.matmul %52, %54, %cst_19 {dimension_numbers = #tpu.dot_dimension_numbers<[1], [1], [0], [0], [0, 0, 1, 0], [], []>} : vector<16x8xbf16>, vector<16x8xbf16>, vector<16x16xf32> -> vector<16x16xf32>
    %cst_20 = arith.constant -1.000000e+06 : f32
    %58 = vector.broadcast %cst_20 : f32 to vector<16x16xf32>
    %59 = arith.select %6, %57, %58 : vector<16x16xi1>, vector<16x16xf32>
    %cst_21 = arith.constant dense<0xFF800000> : vector<16xf32>
    %60 = vector.multi_reduction <maximumf>, %59, %cst_21 [1] : vector<16x16xf32> to vector<16xf32>
    %61 = vector.shape_cast %60 : vector<16xf32> to vector<16x1xf32>
    %62 = vector.broadcast %61 : vector<16x1xf32> to vector<16x16xf32>
    %63 = arith.subf %59, %62 : vector<16x16xf32>
    %64 = math.exp %63 : vector<16x16xf32>
    %cst_22 = arith.constant dense<0.000000e+00> : vector<16xf32>
    %65 = vector.multi_reduction <add>, %64, %cst_22 [1] : vector<16x16xf32> to vector<16xf32>
    %66 = vector.shape_cast %65 : vector<16xf32> to vector<16x1xf32>
    %67 = tpu.reciprocal %66 {approx = true} : vector<16x1xf32> -> vector<16x1xf32>
    %68 = vector.broadcast %67 : vector<16x1xf32> to vector<16x16xf32>
    %69 = arith.mulf %64, %68 : vector<16x16xf32>
    %70 = arith.truncf %69 : vector<16x16xf32> to vector<16x16xbf16>
    %cst_23 = arith.constant dense<0.000000e+00> : vector<16x8xf32>
    %71 = tpu.matmul %70, %56, %cst_23 {dimension_numbers = #tpu.dot_dimension_numbers<[1], [0], [0], [1], [0, 0, 1, 1], [], []>} : vector<16x16xbf16>, vector<16x8xbf16>, vector<16x8xf32> -> vector<16x8xf32>
    %c0_24 = arith.constant 0 : index
    %c16 = arith.constant 16 : index
    %72 = vector.load %arg9[%c0_24, %c16] : memref<16x32xf32, #tpu.memory_space<vmem>>, vector<16x8xf32>
    tpu.vector_store %arg9[%c0_24, %c16], %71 {strides = array<i32>} : memref<16x32xf32, #tpu.memory_space<vmem>>, vector<16x8xf32>,
    %73 = vector.extract_strided_slice %3 {offsets = [0, 24], sizes = [16, 8], strides = [1, 1]} : vector<16x96xf32> to vector<16x8xf32>
    %74 = arith.truncf %73 : vector<16x8xf32> to vector<16x8xbf16>
    %75 = vector.extract_strided_slice %3 {offsets = [0, 56], sizes = [16, 8], strides = [1, 1]} : vector<16x96xf32> to vector<16x8xf32>
    %76 = arith.truncf %75 : vector<16x8xf32> to vector<16x8xbf16>
    %77 = vector.extract_strided_slice %3 {offsets = [0, 88], sizes = [16, 8], strides = [1, 1]} : vector<16x96xf32> to vector<16x8xf32>
    %78 = arith.truncf %77 : vector<16x8xf32> to vector<16x8xbf16>
    %cst_25 = arith.constant dense<0.000000e+00> : vector<16x16xf32>
    %79 = tpu.matmul %74, %76, %cst_25 {dimension_numbers = #tpu.dot_dimension_numbers<[1], [1], [0], [0], [0, 0, 1, 0], [], []>} : vector<16x8xbf16>, vector<16x8xbf16>, vector<16x16xf32> -> vector<16x16xf32>
    %cst_26 = arith.constant -1.000000e+06 : f32
    %80 = vector.broadcast %cst_26 : f32 to vector<16x16xf32>
    %81 = arith.select %6, %79, %80 : vector<16x16xi1>, vector<16x16xf32>
    %cst_27 = arith.constant dense<0xFF800000> : vector<16xf32>
    %82 = vector.multi_reduction <maximumf>, %81, %cst_27 [1] : vector<16x16xf32> to vector<16xf32>
    %83 = vector.shape_cast %82 : vector<16xf32> to vector<16x1xf32>
    %84 = vector.broadcast %83 : vector<16x1xf32> to vector<16x16xf32>
    %85 = arith.subf %81, %84 : vector<16x16xf32>
    %86 = math.exp %85 : vector<16x16xf32>
    %cst_28 = arith.constant dense<0.000000e+00> : vector<16xf32>
    %87 = vector.multi_reduction <add>, %86, %cst_28 [1] : vector<16x16xf32> to vector<16xf32>
    %88 = vector.shape_cast %87 : vector<16xf32> to vector<16x1xf32>
    %89 = tpu.reciprocal %88 {approx = true} : vector<16x1xf32> -> vector<16x1xf32>
    %90 = vector.broadcast %89 : vector<16x1xf32> to vector<16x16xf32>
    %91 = arith.mulf %86, %90 : vector<16x16xf32>
    %92 = arith.truncf %91 : vector<16x16xf32> to vector<16x16xbf16>
    %cst_29 = arith.constant dense<0.000000e+00> : vector<16x8xf32>
    %93 = tpu.matmul %92, %78, %cst_29 {dimension_numbers = #tpu.dot_dimension_numbers<[1], [0], [0], [1], [0, 0, 1, 1], [], []>} : vector<16x16xbf16>, vector<16x8xbf16>, vector<16x8xf32> -> vector<16x8xf32>
    %c0_30 = arith.constant 0 : index
    %c24 = arith.constant 24 : index
    %94 = vector.load %arg9[%c0_30, %c24] : memref<16x32xf32, #tpu.memory_space<vmem>>, vector<16x8xf32>
    tpu.vector_store %arg9[%c0_30, %c24], %93 {strides = array<i32>} : memref<16x32xf32, #tpu.memory_space<vmem>>, vector<16x8xf32>,
    %c0_31 = arith.constant 0 : index
    %c0_32 = arith.constant 0 : index
    %95 = vector.load %arg9[%c0_31, %c0_32] : memref<16x32xf32, #tpu.memory_space<vmem>>, vector<16x32xf32>
    %96 = arith.truncf %95 : vector<16x32xf32> to vector<16x32xbf16>
    %c0_33 = arith.constant 0 : index
    %c0_34 = arith.constant 0 : index
    %97 = vector.load %arg3[%c0_33, %c0_34] : memref<32x32xbf16, #tpu.memory_space<vmem>>, vector<32x32xbf16>
    %cst_35 = arith.constant dense<0.000000e+00> : vector<16x32xf32>
    %98 = tpu.matmul %96, %97, %cst_35 {dimension_numbers = #tpu.dot_dimension_numbers<[1], [0], [0], [1], [0, 0, 1, 1], [], []>} : vector<16x32xbf16>, vector<32x32xbf16>, vector<16x32xf32> -> vector<16x32xf32>
    %c0_36 = arith.constant 0 : index
    %c0_37 = arith.constant 0 : index
    %99 = vector.load %arg6[%c0_36, %c0_37] : memref<5x32xf32, #tpu.memory_space<vmem>>, vector<1x32xf32>
    %c1 = arith.constant 1 : index
    %c0_38 = arith.constant 0 : index
    %100 = vector.load %arg6[%c1, %c0_38] : memref<5x32xf32, #tpu.memory_space<vmem>>, vector<1x32xf32>
    %101 = arith.addf %0, %98 : vector<16x32xf32>
    %cst_39 = arith.constant dense<0.000000e+00> : vector<16xf32>
    %102 = vector.multi_reduction <add>, %101, %cst_39 [1] : vector<16x32xf32> to vector<16xf32>
    %103 = vector.shape_cast %102 : vector<16xf32> to vector<16x1xf32>
    %cst_40 = arith.constant 3.200000e+01 : f32
    %104 = vector.broadcast %cst_40 : f32 to vector<16x1xf32>
    %105 = arith.divf %103, %104 : vector<16x1xf32>
    %106 = vector.broadcast %105 : vector<16x1xf32> to vector<16x32xf32>
    %107 = arith.subf %101, %106 : vector<16x32xf32>
    %108 = arith.mulf %107, %107 : vector<16x32xf32>
    %cst_41 = arith.constant dense<0.000000e+00> : vector<16xf32>
    %109 = vector.multi_reduction <add>, %108, %cst_41 [1] : vector<16x32xf32> to vector<16xf32>
    %110 = vector.shape_cast %109 : vector<16xf32> to vector<16x1xf32>
    %cst_42 = arith.constant 3.200000e+01 : f32
    %111 = vector.broadcast %cst_42 : f32 to vector<16x1xf32>
    %112 = arith.divf %110, %111 : vector<16x1xf32>
    %113 = vector.broadcast %105 : vector<16x1xf32> to vector<16x32xf32>
    %114 = arith.subf %101, %113 : vector<16x32xf32>
    %cst_43 = arith.constant 9.99999974E-6 : f32
    %115 = vector.broadcast %cst_43 : f32 to vector<16x1xf32>
    %116 = arith.addf %112, %115 : vector<16x1xf32>
    %117 = math.rsqrt %116 : vector<16x1xf32>
    %118 = vector.broadcast %117 : vector<16x1xf32> to vector<16x32xf32>
    %119 = arith.mulf %114, %118 : vector<16x32xf32>
    %120 = vector.broadcast %99 : vector<1x32xf32> to vector<16x32xf32>
    %121 = arith.mulf %119, %120 : vector<16x32xf32>
    %122 = vector.broadcast %100 : vector<1x32xf32> to vector<16x32xf32>
    %123 = arith.addf %121, %122 : vector<16x32xf32>
    %124 = arith.truncf %123 : vector<16x32xf32> to vector<16x32xbf16>
    %c0_44 = arith.constant 0 : index
    %c0_45 = arith.constant 0 : index
    %125 = vector.load %arg4[%c0_44, %c0_45] : memref<32x64xbf16, #tpu.memory_space<vmem>>, vector<32x64xbf16>
    %cst_46 = arith.constant dense<0.000000e+00> : vector<16x64xf32>
    %126 = tpu.matmul %124, %125, %cst_46 {dimension_numbers = #tpu.dot_dimension_numbers<[1], [0], [0], [1], [0, 0, 1, 1], [], []>} : vector<16x32xbf16>, vector<32x64xbf16>, vector<16x64xf32> -> vector<16x64xf32>
    %c0_47 = arith.constant 0 : index
    %c0_48 = arith.constant 0 : index
    %127 = vector.load %arg7[%c0_47, %c0_48] : memref<1x64xf32, #tpu.memory_space<vmem>>, vector<1x64xf32>
    %128 = vector.broadcast %127 : vector<1x64xf32> to vector<16x64xf32>
    %129 = arith.addf %126, %128 : vector<16x64xf32>
    %cst_49 = arith.constant 0.000000e+00 : f32
    %130 = vector.broadcast %cst_49 : f32 to vector<16x64xf32>
    %131 = arith.maximumf %129, %130 : vector<16x64xf32>
    %132 = arith.truncf %131 : vector<16x64xf32> to vector<16x64xbf16>
    %c0_50 = arith.constant 0 : index
    %c0_51 = arith.constant 0 : index
    %133 = vector.load %arg5[%c0_50, %c0_51] : memref<64x32xbf16, #tpu.memory_space<vmem>>, vector<64x32xbf16>
    %cst_52 = arith.constant dense<0.000000e+00> : vector<16x32xf32>
    %134 = tpu.matmul %132, %133, %cst_52 {dimension_numbers = #tpu.dot_dimension_numbers<[1], [0], [0], [1], [0, 0, 1, 1], [], []>} : vector<16x64xbf16>, vector<64x32xbf16>, vector<16x32xf32> -> vector<16x32xf32>
    %c4 = arith.constant 4 : index
    %c0_53 = arith.constant 0 : index
    %135 = vector.load %arg6[%c4, %c0_53] : memref<5x32xf32, #tpu.memory_space<vmem>>, vector<1x32xf32>
    %136 = vector.broadcast %135 : vector<1x32xf32> to vector<16x32xf32>
    %137 = arith.addf %134, %136 : vector<16x32xf32>
    %c2 = arith.constant 2 : index
    %c0_54 = arith.constant 0 : index
    %138 = vector.load %arg6[%c2, %c0_54] : memref<5x32xf32, #tpu.memory_space<vmem>>, vector<1x32xf32>
    %c3 = arith.constant 3 : index
    %c0_55 = arith.constant 0 : index
    %139 = vector.load %arg6[%c3, %c0_55] : memref<5x32xf32, #tpu.memory_space<vmem>>, vector<1x32xf32>
    %140 = arith.addf %123, %137 : vector<16x32xf32>
    %cst_56 = arith.constant dense<0.000000e+00> : vector<16xf32>
    %141 = vector.multi_reduction <add>, %140, %cst_56 [1] : vector<16x32xf32> to vector<16xf32>
    %142 = vector.shape_cast %141 : vector<16xf32> to vector<16x1xf32>
    %cst_57 = arith.constant 3.200000e+01 : f32
    %143 = vector.broadcast %cst_57 : f32 to vector<16x1xf32>
    %144 = arith.divf %142, %143 : vector<16x1xf32>
    %145 = vector.broadcast %144 : vector<16x1xf32> to vector<16x32xf32>
    %146 = arith.subf %140, %145 : vector<16x32xf32>
    %147 = arith.mulf %146, %146 : vector<16x32xf32>
    %cst_58 = arith.constant dense<0.000000e+00> : vector<16xf32>
    %148 = vector.multi_reduction <add>, %147, %cst_58 [1] : vector<16x32xf32> to vector<16xf32>
    %149 = vector.shape_cast %148 : vector<16xf32> to vector<16x1xf32>
    %cst_59 = arith.constant 3.200000e+01 : f32
    %150 = vector.broadcast %cst_59 : f32 to vector<16x1xf32>
    %151 = arith.divf %149, %150 : vector<16x1xf32>
    %152 = vector.broadcast %144 : vector<16x1xf32> to vector<16x32xf32>
    %153 = arith.subf %140, %152 : vector<16x32xf32>
    %cst_60 = arith.constant 9.99999974E-6 : f32
    %154 = vector.broadcast %cst_60 : f32 to vector<16x1xf32>
    %155 = arith.addf %151, %154 : vector<16x1xf32>
    %156 = math.rsqrt %155 : vector<16x1xf32>
    %157 = vector.broadcast %156 : vector<16x1xf32> to vector<16x32xf32>
    %158 = arith.mulf %153, %157 : vector<16x32xf32>
    %159 = vector.broadcast %138 : vector<1x32xf32> to vector<16x32xf32>
    %160 = arith.mulf %158, %159 : vector<16x32xf32>
    %161 = vector.broadcast %139 : vector<1x32xf32> to vector<16x32xf32>
    %162 = arith.addf %160, %161 : vector<16x32xf32>
    %c0_61 = arith.constant 0 : index
    %c0_62 = arith.constant 0 : index
    %163 = vector.load %arg8[%c0_61, %c0_62] : memref<16x32xf32, #tpu.memory_space<vmem>>, vector<16x32xf32>
    tpu.vector_store %arg8[%c0_61, %c0_62], %162 {strides = array<i32>} : memref<16x32xf32, #tpu.memory_space<vmem>>, vector<16x32xf32>,
    return
  }
}

</mosaic_0001>

<llo_original>
// kernel: tpu_custom_call.1
$region0: #{tpu_custom_call.1}
  #allocation0 [shape = 'u32[]', space=smem, size = 0x4, offset = 0x4, fixed_abs, tag = 'smem constant byte address 0x4 - core index']
  #allocation1 [shape = 'u32[72,128]{1,0:T(1,128)}', space=vmem, size = 0x9000, scoped, tag = 'internal scratch']
  #allocation2 [shape = 'f32[16,32]{1,0:T(8,128)}', space=vmem, size = 0x2000, scoped, tag = 'scratch operand']
  %s0 = inlined_call_operand.vmem [shape: f32[16,32], index: 0, kind: input, shape index: {}]
  %s1 = inlined_call_operand.vmem [shape: f32[16,16], index: 1, kind: input, shape index: {}]
  %s2 = inlined_call_operand.vmem [shape: bf16[32,96], index: 2, kind: input, shape index: {}]
  %s3 = inlined_call_operand.hbm [shape: bf16[32,32], index: 3, kind: input, shape index: {}]
  %s4 = inlined_call_operand.hbm [shape: bf16[32,64], index: 4, kind: input, shape index: {}]
  %s5 = inlined_call_operand.vmem [shape: bf16[64,32], index: 5, kind: input, shape index: {}]
  %s6 = inlined_call_operand.hbm [shape: f32[5,32], index: 6, kind: input, shape index: {}]
  %s7 = inlined_call_operand.vmem [shape: f32[1,64], index: 7, kind: input, shape index: {}]
  %s8 = inlined_call_operand.hbm [shape: f32[16,32], index: 8, kind: output, shape index: {}]
  %s9 = sld [smem:[#allocation0]]
  $region54: #{tpu_custom_call.1} parent=0
    _
  %s11 = ssub.s32 1, %s9
  %s12 = scalar_select 0, %s11, %s9
  $region1: #{tpu_custom_call.1} parent=0
    #allocation3 [shape = 'u8[8192]{0}', space=vmem, size = 0x2000, scoped, tag = 'input window, operand 3, single buffered']
    #allocation4 [shape = 's32[1]{0}', space=sflag, size = 0x4, scoped, tag = 'scoped memory for tpu_custom_call.1']
    #allocation5 [shape = 's32[1]{0}', space=sflag, size = 0x4, scoped, tag = 'scoped memory for tpu_custom_call.1']
    #allocation6 [shape = 'u8[8192]{0}', space=vmem, size = 0x2000, scoped, tag = 'input window, operand 4, single buffered']
    #allocation7 [shape = 's32[1]{0}', space=sflag, size = 0x4, scoped, tag = 'scoped memory for tpu_custom_call.1']
    #allocation8 [shape = 'u8[4096]{0}', space=vmem, size = 0x1000, scoped, tag = 'input window, operand 6, single buffered']
    #allocation9 [shape = 'u8[8192]{0}', space=vmem, size = 0x2000, scoped, tag = 'output window, operand 0, single buffered']
    %13 = vsyncpa [#allocation4], 0
    %14 = vsyncpa [#allocation7], 0
    %15 = vsyncpa [#allocation5], 0
    // Predicated region
    $region2: #{tpu_custom_call.1} parent=1 // pred_check
      _
    $region3: #{tpu_custom_call.1} parent=1 // pred_check_branch
      %17 = sbr.rel (0) target = $region5
    $region4: #{tpu_custom_call.1} parent=1 // pred_region
      _
    $region5: #{tpu_custom_call.1} parent=1 // pred_fallthru
      _
    // Predicated region
    $region6: #{tpu_custom_call.1} parent=1 // pred_check
      _
    $region7: #{tpu_custom_call.1} parent=1 // pred_check_branch
      %19 = sbr.rel (0) target = $region9
    $region8: #{tpu_custom_call.1} parent=1 // pred_region
      _
    $region9: #{tpu_custom_call.1} parent=1 // pred_fallthru
      _
    // Predicated region
    $region10: #{tpu_custom_call.1} parent=1 // pred_check
      _
    $region11: #{tpu_custom_call.1} parent=1 // pred_check_branch
      %21 = sbr.rel (0) target = $region13
    $region12: #{tpu_custom_call.1} parent=1 // pred_region
      _
    $region13: #{tpu_custom_call.1} parent=1 // pred_fallthru
      _
    // Predicated region
    $region14: #{tpu_custom_call.1} parent=1 // pred_check
      _
    $region15: #{tpu_custom_call.1} parent=1 // pred_check_branch
      %23 = sbr.rel (0) target = $region17
    $region16: #{tpu_custom_call.1} parent=1 // pred_region
      %25 = vsyncadd [#allocation4], 0
      %s26 = sshll.u32 %s3, 4
      %s27 = int_to_ptr.hbm [resolvable:$true] %s26
      %s28 = sshll.u32 [#allocation3], 4
      %s29 = int_to_ptr.vmem [resolvable:$true] %s28
      %34 = dma.hbm_to_vmem [thread:$0]  %s27, 256, %s29, [#allocation4], 64, 64, 4
    $region17: #{tpu_custom_call.1} parent=1 // pred_fallthru
      _
    // Predicated region
    $region18: #{tpu_custom_call.1} parent=1 // pred_check
      _
    $region19: #{tpu_custom_call.1} parent=1 // pred_check_branch
      %36 = sbr.rel (0) target = $region21
    $region20: #{tpu_custom_call.1} parent=1 // pred_region
      %38 = vsyncadd [#allocation7], 0
      %s39 = sshll.u32 %s4, 4
      %s40 = int_to_ptr.hbm [resolvable:$true] %s39
      %s41 = sshll.u32 [#allocation6], 4
      %s42 = int_to_ptr.vmem [resolvable:$true] %s41
      %47 = dma.hbm_to_vmem [thread:$0]  %s40, 256, %s42, [#allocation7], 64, 64, 4
    $region21: #{tpu_custom_call.1} parent=1 // pred_fallthru
      _
    // Predicated region
    $region22: #{tpu_custom_call.1} parent=1 // pred_check
      _
    $region23: #{tpu_custom_call.1} parent=1 // pred_check_branch
      %49 = sbr.rel (0) target = $region25
    $region24: #{tpu_custom_call.1} parent=1 // pred_region
      _
    $region25: #{tpu_custom_call.1} parent=1 // pred_fallthru
      _
    // Predicated region
    $region26: #{tpu_custom_call.1} parent=1 // pred_check
      _
    $region27: #{tpu_custom_call.1} parent=1 // pred_check_branch
      %51 = sbr.rel (0) target = $region29
    $region28: #{tpu_custom_call.1} parent=1 // pred_region
      %53 = vsyncadd [#allocation7], 0
      %s55 = sshll.u32 %s6, 4
      %s56 = int_to_ptr.hbm [resolvable:$true] %s55
      %s57 = sshll.u32 [#allocation8], 4
      %s58 = int_to_ptr.vmem [resolvable:$true] %s57
      %60 = dma.hbm_to_vmem [thread:$0]  %s56, 128, %s58, [#allocation7]
    $region29: #{tpu_custom_call.1} parent=1 // pred_fallthru
      _
    // Predicated region
    $region30: #{tpu_custom_call.1} parent=1 // pred_check
      _
    $region31: #{tpu_custom_call.1} parent=1 // pred_check_branch
      %62 = sbr.rel (0) target = $region33
    $region32: #{tpu_custom_call.1} parent=1 // pred_region
      _
    $region33: #{tpu_custom_call.1} parent=1 // pred_fallthru
      _
    // Predicated region
    $region34: #{tpu_custom_call.1} parent=1 // pred_check
      _
    $region35: #{tpu_custom_call.1} parent=1 // pred_check_branch
      %64 = sbr.rel (0) target = $region37
    $region36: #{tpu_custom_call.1} parent=1 // pred_region
      %66 = dma.done [#allocation4], 256
    $region37: #{tpu_custom_call.1} parent=1 // pred_fallthru
      _
    // Predicated region
    $region38: #{tpu_custom_call.1} parent=1 // pred_check
      _
    $region39: #{tpu_custom_call.1} parent=1 // pred_check_branch
      %68 = sbr.rel (0) target = $region41
    $region40: #{tpu_custom_call.1} parent=1 // pred_region
      %70 = dma.done [#allocation7], 256
    $region41: #{tpu_custom_call.1} parent=1 // pred_fallthru
      _
    // Predicated region
    $region42: #{tpu_custom_call.1} parent=1 // pred_check
      _
    $region43: #{tpu_custom_call.1} parent=1 // pred_check_branch
      %72 = sbr.rel (0) target = $region45
    $region44: #{tpu_custom_call.1} parent=1 // pred_region
      %74 = dma.done [#allocation7], 128
    $region45: #{tpu_custom_call.1} parent=1 // pred_fallthru
      _
    %v76 = vld [vmem:[%s0] sm:$0xff]
    %v77 = vld [vmem:[%s0 + $0x8] sm:$0xff]
    %v78 = vpack.c.bf16 %v77, %v76
    %v79 = vld [vmem:[%s2] sm:$0xf]
    %v80 = vld [vmem:[%s2 + $0x4] sm:$0xf]
    %v81 = vld [vmem:[%s2 + $0x8] sm:$0xf]
    %v82 = vld [vmem:[%s2 + $0xc] sm:$0xf]
    %v87 = vunpack.c.l.b16 %v79
    %v88 = vunpack.c.l.b16 %v80
    %v89 = vunpack.c.l.b16 %v81
    %v90 = vunpack.c.l.b16 %v82
    %v91 = vpack.c.b16 %v88, %v87
    %v92 = vpack.c.b16 %v90, %v89
    %vm95 = vcmask 261120
    %v97 = vsel %vm95, %v78, 0
    %99 = vmatpush.bf16.msra.mxu0 0
    %100 = vmatpush.bf16.msra.mxu0 0
    %101 = vmatpush.bf16.msra.mxu0 0
    %102 = vmatpush.bf16.msra.mxu0 0
    %103 = vmatpush.bf16.msra.mxu0 0
    %104 = vmatpush.bf16.msra.mxu0 0
    %105 = vmatpush.bf16.msra.mxu0 %v92
    %106 = vmatpush.bf16.msra.mxu0 %v91
    %107 = vmatmul.bf16.gmra.mxu0 %v97
    %v108 = vpop.f32.mrf.mxu0
    %v109 = vadd.f32 0.0, %v108
    %v110 = vpop.f32.mrf.mxu0
    %v111 = vadd.f32 0.0, %v110
    %112 = vdwg.mxu0
    %v113 = vld [vmem:[%s1] sm:$0xff]
    %v114 = vld [vmem:[%s1 + $0x8] sm:$0xff]
    %vm115 = vcmp.gt.f32.partialorder %v113, 0.5
    %vm116 = vcmp.gt.f32.partialorder %v114, 0.5
    %v117 = vpack.c.bf16 %v111, %v109
    %119 = vrot.lane.b32.xlu0 %v117, 96
    %v120 = vpop.permute.xlu0 %119
    %vm121 = vcmask 64512
    %v123 = vsel %vm121, %v117, 0
    %v126 = vsel %vm121, %v120, 0
    %128 = vmatpush.bf16.xpose.msra.mxu0 0
    %129 = vmatpush.bf16.xpose.msra.mxu0 0
    %130 = vmatpush.bf16.xpose.msra.mxu0 0
    %131 = vmatpush.bf16.xpose.msra.mxu0 0
    %132 = vmatpush.bf16.xpose.msra.mxu0 0
    %133 = vmatpush.bf16.xpose.msra.mxu0 0
    %134 = vmatpush.bf16.xpose.msra.mxu0 0
    %135 = vmatpush.bf16.xpose.msra.mxu0 %v126
    %136 = vmatmul.bf16.gmra.mxu0 %v123
    %v137 = vpop.f32.mrf.mxu0
    %v138 = vadd.f32 0.0, %v137
    %v139 = vpop.f32.mrf.mxu0
    %v140 = vadd.f32 0.0, %v139
    %141 = vdwg.mxu0
    %v142 = vsel %vm115, %v138, -1000000.0
    %v143 = vsel %vm116, %v140, -1000000.0
    %vm144 = vcmask 130048
    %v145 = vsel %vm144, %v142, -inf
    %146 = vmax.xlane.f32.xlu0 %v145
    %v147 = vpop.xlane.xlu0 %146
    %v148 = vsel %vm144, %v143, -inf
    %149 = vmax.xlane.f32.xlu0 %v148
    %v150 = vpop.xlane.xlu0 %149
    %v151 = vsub.f32 %v142, %v147
    %v152 = vsub.f32 %v143, %v150
    %v153 = vmul.f32 %v151, 1.442695
    %v154 = vpow.pop %v153
    %v155 = vmul.f32 %v152, 1.442695
    %v156 = vpow.pop %v155
    %v157 = vsel %vm144, %v154, 0.0
    %158 = vadd.xlane.f32.xlu0 %v157
    %v159 = vpop.xlane.xlu0 %158
    %v160 = vsel %vm144, %v156, 0.0
    %161 = vadd.xlane.f32.xlu0 %v160
    %v162 = vpop.xlane.xlu0 %161
    %v163 = vrcp.pop %v159
    %v164 = vrcp.pop %v162
    %v165 = vmul.f32 %v154, %v163
    %v166 = vmul.f32 %v156, %v164
    %v167 = vpack.c.bf16 %v166, %v165
    %168 = vrot.lane.b32.xlu0 %v117, 64
    %v169 = vpop.permute.xlu0 %168
    %v172 = vsel %vm144, %v167, 0
    %174 = vmatpush.bf16.msra.mxu0 0
    %175 = vmatpush.bf16.msra.mxu0 0
    %176 = vmatpush.bf16.msra.mxu0 0
    %177 = vmatpush.bf16.msra.mxu0 0
    %178 = vmatpush.bf16.msra.mxu0 0
    %179 = vmatpush.bf16.msra.mxu0 0
    %180 = vmatpush.bf16.msra.mxu0 0
    %181 = vmatpush.bf16.msra.mxu0 %v169
    %182 = vmatmul.bf16.gmra.mxu0 %v172
    %v183 = vpop.f32.mrf.mxu0
    %v184 = vadd.f32 0.0, %v183
    %v185 = vpop.f32.mrf.mxu0
    %v186 = vadd.f32 0.0, %v185
    %187 = vdwg.mxu0
    %188 = vst.msk [vmem:[#allocation2] sm:$0xff] %vm121, %v184
    %189 = vst.msk [vmem:[#allocation2 + $0x8] sm:$0xff] %vm121, %v186
    %190 = vrot.lane.b32.xlu0 %v117, 120
    %v191 = vpop.permute.xlu0 %190
    %192 = vrot.lane.b32.xlu0 %v117, 88
    %v193 = vpop.permute.xlu0 %192
    %v195 = vsel %vm121, %v191, 0
    %v198 = vsel %vm121, %v193, 0
    %200 = vmatpush.bf16.xpose.msra.mxu0 0
    %201 = vmatpush.bf16.xpose.msra.mxu0 0
    %202 = vmatpush.bf16.xpose.msra.mxu0 0
    %203 = vmatpush.bf16.xpose.msra.mxu0 0
    %204 = vmatpush.bf16.xpose.msra.mxu0 0
    %205 = vmatpush.bf16.xpose.msra.mxu0 0
    %206 = vmatpush.bf16.xpose.msra.mxu0 0
    %207 = vmatpush.bf16.xpose.msra.mxu0 %v198
    %208 = vmatmul.bf16.gmra.mxu0 %v195
    %v209 = vpop.f32.mrf.mxu0
    %v210 = vadd.f32 0.0, %v209
    %v211 = vpop.f32.mrf.mxu0
    %v212 = vadd.f32 0.0, %v211
    %213 = vdwg.mxu0
    %v214 = vsel %vm115, %v210, -1000000.0
    %v215 = vsel %vm116, %v212, -1000000.0
    %v216 = vsel %vm144, %v214, -inf
    %217 = vmax.xlane.f32.xlu0 %v216
    %v218 = vpop.xlane.xlu0 %217
    %v219 = vsel %vm144, %v215, -inf
    %220 = vmax.xlane.f32.xlu0 %v219
    %v221 = vpop.xlane.xlu0 %220
    %v222 = vsub.f32 %v214, %v218
    %v223 = vsub.f32 %v215, %v221
    %v224 = vmul.f32 %v222, 1.442695
    %v225 = vpow.pop %v224
    %v226 = vmul.f32 %v223, 1.442695
    %v227 = vpow.pop %v226
    %v228 = vsel %vm144, %v225, 0.0
    %229 = vadd.xlane.f32.xlu0 %v228
    %v230 = vpop.xlane.xlu0 %229
    %v231 = vsel %vm144, %v227, 0.0
    %232 = vadd.xlane.f32.xlu0 %v231
    %v233 = vpop.xlane.xlu0 %232
    %v234 = vrcp.pop %v230
    %v235 = vrcp.pop %v233
    %v236 = vmul.f32 %v225, %v234
    %v237 = vmul.f32 %v227, %v235
    %v238 = vpack.c.bf16 %v237, %v236
    %239 = vrot.lane.b32.xlu0 %v117, 56
    %v240 = vpop.permute.xlu0 %239
    %v243 = vsel %vm144, %v238, 0
    %245 = vmatpush.bf16.msra.mxu0 0
    %246 = vmatpush.bf16.msra.mxu0 0
    %247 = vmatpush.bf16.msra.mxu0 0
    %248 = vmatpush.bf16.msra.mxu0 0
    %249 = vmatpush.bf16.msra.mxu0 0
    %250 = vmatpush.bf16.msra.mxu0 0
    %251 = vmatpush.bf16.msra.mxu0 0
    %252 = vmatpush.bf16.msra.mxu0 %v240
    %253 = vmatmul.bf16.gmra.mxu0 %v243
    %v254 = vpop.f32.mrf.mxu0
    %v255 = vadd.f32 0.0, %v254
    %v256 = vpop.f32.mrf.mxu0
    %v257 = vadd.f32 0.0, %v256
    %258 = vdwg.mxu0
    %261 = vrot.lane.b32.xlu0 %v255, 8
    %v262 = vpop.permute.xlu0 %261
    %263 = vrot.lane.b32.xlu0 %v257, 8
    %v264 = vpop.permute.xlu0 %263
    %vm267 = vcmask 130112
    %268 = vst.msk [vmem:[#allocation2] sm:$0xff] %vm267, %v262
    %269 = vst.msk [vmem:[#allocation2 + $0x8] sm:$0xff] %vm267, %v264
    %270 = vrot.lane.b32.xlu0 %v117, 112
    %v271 = vpop.permute.xlu0 %270
    %272 = vrot.lane.b32.xlu0 %v117, 80
    %v273 = vpop.permute.xlu0 %272
    %v275 = vsel %vm121, %v271, 0
    %v278 = vsel %vm121, %v273, 0
    %280 = vmatpush.bf16.xpose.msra.mxu0 0
    %281 = vmatpush.bf16.xpose.msra.mxu0 0
    %282 = vmatpush.bf16.xpose.msra.mxu0 0
    %283 = vmatpush.bf16.xpose.msra.mxu0 0
    %284 = vmatpush.bf16.xpose.msra.mxu0 0
    %285 = vmatpush.bf16.xpose.msra.mxu0 0
    %286 = vmatpush.bf16.xpose.msra.mxu0 0
    %287 = vmatpush.bf16.xpose.msra.mxu0 %v278
    %288 = vmatmul.bf16.gmra.mxu0 %v275
    %v289 = vpop.f32.mrf.mxu0
    %v290 = vadd.f32 0.0, %v289
    %v291 = vpop.f32.mrf.mxu0
    %v292 = vadd.f32 0.0, %v291
    %293 = vdwg.mxu0
    %v294 = vsel %vm115, %v290, -1000000.0
    %v295 = vsel %vm116, %v292, -1000000.0
    %v296 = vsel %vm144, %v294, -inf
    %297 = vmax.xlane.f32.xlu0 %v296
    %v298 = vpop.xlane.xlu0 %297
    %v299 = vsel %vm144, %v295, -inf
    %300 = vmax.xlane.f32.xlu0 %v299
    %v301 = vpop.xlane.xlu0 %300
    %v302 = vsub.f32 %v294, %v298
    %v303 = vsub.f32 %v295, %v301
    %v304 = vmul.f32 %v302, 1.442695
    %v305 = vpow.pop %v304
    %v306 = vmul.f32 %v303, 1.442695
    %v307 = vpow.pop %v306
    %v308 = vsel %vm144, %v305, 0.0
    %309 = vadd.xlane.f32.xlu0 %v308
    %v310 = vpop.xlane.xlu0 %309
    %v311 = vsel %vm144, %v307, 0.0
    %312 = vadd.xlane.f32.xlu0 %v311
    %v313 = vpop.xlane.xlu0 %312
    %v314 = vrcp.pop %v310
    %v315 = vrcp.pop %v313
    %v316 = vmul.f32 %v305, %v314
    %v317 = vmul.f32 %v307, %v315
    %v318 = vpack.c.bf16 %v317, %v316
    %319 = vrot.lane.b32.xlu0 %v117, 48
    %v320 = vpop.permute.xlu0 %319
    %v323 = vsel %vm144, %v318, 0
    %325 = vmatpush.bf16.msra.mxu0 0
    %326 = vmatpush.bf16.msra.mxu0 0
    %327 = vmatpush.bf16.msra.mxu0 0
    %328 = vmatpush.bf16.msra.mxu0 0
    %329 = vmatpush.bf16.msra.mxu0 0
    %330 = vmatpush.bf16.msra.mxu0 0
    %331 = vmatpush.bf16.msra.mxu0 0
    %332 = vmatpush.bf16.msra.mxu0 %v320
    %333 = vmatmul.bf16.gmra.mxu0 %v323
    %v334 = vpop.f32.mrf.mxu0
    %v335 = vadd.f32 0.0, %v334
    %v336 = vpop.f32.mrf.mxu0
    %v337 = vadd.f32 0.0, %v336
    %338 = vdwg.mxu0
    %341 = vrot.lane.b32.xlu0 %v335, 16
    %v342 = vpop.permute.xlu0 %341
    %343 = vrot.lane.b32.xlu0 %v337, 16
    %v344 = vpop.permute.xlu0 %343
    %vm347 = vcmask 195712
    %348 = vst.msk [vmem:[#allocation2] sm:$0xff] %vm347, %v342
    %349 = vst.msk [vmem:[#allocation2 + $0x8] sm:$0xff] %vm347, %v344
    %350 = vrot.lane.b32.xlu0 %v117, 104
    %v351 = vpop.permute.xlu0 %350
    %352 = vrot.lane.b32.xlu0 %v117, 72
    %v353 = vpop.permute.xlu0 %352
    %v355 = vsel %vm121, %v351, 0
    %v358 = vsel %vm121, %v353, 0
    %360 = vmatpush.bf16.xpose.msra.mxu0 0
    %361 = vmatpush.bf16.xpose.msra.mxu0 0
    %362 = vmatpush.bf16.xpose.msra.mxu0 0
    %363 = vmatpush.bf16.xpose.msra.mxu0 0
    %364 = vmatpush.bf16.xpose.msra.mxu0 0
    %365 = vmatpush.bf16.xpose.msra.mxu0 0
    %366 = vmatpush.bf16.xpose.msra.mxu0 0
    %367 = vmatpush.bf16.xpose.msra.mxu0 %v358
    %368 = vmatmul.bf16.gmra.mxu0 %v355
    %v369 = vpop.f32.mrf.mxu0
    %v370 = vadd.f32 0.0, %v369
    %v371 = vpop.f32.mrf.mxu0
    %v372 = vadd.f32 0.0, %v371
    %373 = vdwg.mxu0
    %v374 = vsel %vm115, %v370, -1000000.0
    %v375 = vsel %vm116, %v372, -1000000.0
    %v376 = vsel %vm144, %v374, -inf
    %377 = vmax.xlane.f32.xlu0 %v376
    %v378 = vpop.xlane.xlu0 %377
    %v379 = vsel %vm144, %v375, -inf
    %380 = vmax.xlane.f32.xlu0 %v379
    %v381 = vpop.xlane.xlu0 %380
    %v382 = vsub.f32 %v374, %v378
    %v383 = vsub.f32 %v375, %v381
    %v384 = vmul.f32 %v382, 1.442695
    %v385 = vpow.pop %v384
    %v386 = vmul.f32 %v383, 1.442695
    %v387 = vpow.pop %v386
    %v388 = vsel %vm144, %v385, 0.0
    %389 = vadd.xlane.f32.xlu0 %v388
    %v390 = vpop.xlane.xlu0 %389
    %v391 = vsel %vm144, %v387, 0.0
    %392 = vadd.xlane.f32.xlu0 %v391
    %v393 = vpop.xlane.xlu0 %392
    %v394 = vrcp.pop %v390
    %v395 = vrcp.pop %v393
    %v396 = vmul.f32 %v385, %v394
    %v397 = vmul.f32 %v387, %v395
    %v398 = vpack.c.bf16 %v397, %v396
    %399 = vrot.lane.b32.xlu0 %v117, 40
    %v400 = vpop.permute.xlu0 %399
    %v403 = vsel %vm144, %v398, 0
    %405 = vmatpush.bf16.msra.mxu0 0
    %406 = vmatpush.bf16.msra.mxu0 0
    %407 = vmatpush.bf16.msra.mxu0 0
    %408 = vmatpush.bf16.msra.mxu0 0
    %409 = vmatpush.bf16.msra.mxu0 0
    %410 = vmatpush.bf16.msra.mxu0 0
    %411 = vmatpush.bf16.msra.mxu0 0
    %412 = vmatpush.bf16.msra.mxu0 %v400
    %413 = vmatmul.bf16.gmra.mxu0 %v403
    %v414 = vpop.f32.mrf.mxu0
    %v415 = vadd.f32 0.0, %v414
    %v416 = vpop.f32.mrf.mxu0
    %v417 = vadd.f32 0.0, %v416
    %418 = vdwg.mxu0
    %421 = vrot.lane.b32.xlu0 %v415, 24
    %v422 = vpop.permute.xlu0 %421
    %423 = vrot.lane.b32.xlu0 %v417, 24
    %v424 = vpop.permute.xlu0 %423
    %vm427 = vcmask 261312
    %428 = vst.msk [vmem:[#allocation2] sm:$0xff] %vm427, %v422
    %429 = vst.msk [vmem:[#allocation2 + $0x8] sm:$0xff] %vm427, %v424
    %v430 = vld [vmem:[#allocation2] sm:$0xff]
    %v431 = vld [vmem:[#allocation2 + $0x8] sm:$0xff]
    %v432 = vpack.c.bf16 %v431, %v430
    %v433 = vld [vmem:[#allocation3] sm:$0xf]
    %v434 = vld [vmem:[#allocation3 + $0x4] sm:$0xf]
    %v435 = vld [vmem:[#allocation3 + $0x8] sm:$0xf]
    %v436 = vld [vmem:[#allocation3 + $0xc] sm:$0xf]
    %v441 = vunpack.c.l.b16 %v433
    %v442 = vunpack.c.l.b16 %v434
    %v443 = vunpack.c.l.b16 %v435
    %v444 = vunpack.c.l.b16 %v436
    %v445 = vpack.c.b16 %v442, %v441
    %v446 = vpack.c.b16 %v444, %v443
    %v450 = vsel %vm95, %v432, 0
    %452 = vmatpush.bf16.msra.mxu0 0
    %453 = vmatpush.bf16.msra.mxu0 0
    %454 = vmatpush.bf16.msra.mxu0 0
    %455 = vmatpush.bf16.msra.mxu0 0
    %456 = vmatpush.bf16.msra.mxu0 0
    %457 = vmatpush.bf16.msra.mxu0 0
    %458 = vmatpush.bf16.msra.mxu0 %v446
    %459 = vmatpush.bf16.msra.mxu0 %v445
    %460 = vmatmul.bf16.gmra.mxu0 %v450
    %v461 = vpop.f32.mrf.mxu0
    %v462 = vadd.f32 0.0, %v461
    %v463 = vpop.f32.mrf.mxu0
    %v464 = vadd.f32 0.0, %v463
    %465 = vdwg.mxu0
    %v466 = vld [vmem:[#allocation8] sm:$0x1]
    %v467 = vld [vmem:[#allocation8 + $0x1] sm:$0x1]
    %v468 = vadd.f32 %v76, %v462
    %v469 = vadd.f32 %v77, %v464
    %v470 = vsel %vm95, %v468, 0.0
    %471 = vadd.xlane.f32.xlu0 %v470
    %v472 = vpop.xlane.xlu0 %471
    %v473 = vsel %vm95, %v469, 0.0
    %474 = vadd.xlane.f32.xlu0 %v473
    %v475 = vpop.xlane.xlu0 %474
    %v476 = vrcp.pop 32.0
    %v477 = vmul.f32 32.0, %v476
    %v478 = vsub.f32 1.0, %v477
    %v479 = vmul.f32 %v476, %v478
    %v480 = vadd.f32 %v476, %v479
    %vm481 = vweird.f32 %v476
    %v482 = vsel %vm481, %v476, %v480
    %v483 = vmul.f32 %v472, %v482
    %v484 = vmul.f32 %v475, %v482
    %v485 = vsub.f32 %v468, %v483
    %v486 = vsub.f32 %v469, %v484
    %v487 = vmul.f32 %v485, %v485
    %v488 = vmul.f32 %v486, %v486
    %v489 = vsel %vm95, %v487, 0.0
    %490 = vadd.xlane.f32.xlu0 %v489
    %v491 = vpop.xlane.xlu0 %490
    %v492 = vsel %vm95, %v488, 0.0
    %493 = vadd.xlane.f32.xlu0 %v492
    %v494 = vpop.xlane.xlu0 %493
    %v495 = vmul.f32 %v491, %v482
    %v496 = vmul.f32 %v494, %v482
    %v497 = vadd.f32 %v495, 1e-05
    %v498 = vadd.f32 %v496, 1e-05
    %v499 = vrsqrt.pop %v497
    %v500 = vmul.f32 %v499, %v497
    %v501 = vmul.f32 %v500, %v499
    %v502 = vmul.f32 0.5, %v501
    %v503 = vsub.f32 1.5, %v502
    %v504 = vmul.f32 %v499, %v503
    %vm505 = vweird.f32 %v497
    %vm506 = vweird.f32 %v499
    %vm507 = vmor %vm505, %vm506
    %v508 = vsel %vm507, %v499, %v504
    %v509 = vrsqrt.pop %v498
    %v510 = vmul.f32 %v509, %v498
    %v511 = vmul.f32 %v510, %v509
    %v512 = vmul.f32 0.5, %v511
    %v513 = vsub.f32 1.5, %v512
    %v514 = vmul.f32 %v509, %v513
    %vm515 = vweird.f32 %v498
    %vm516 = vweird.f32 %v509
    %vm517 = vmor %vm515, %vm516
    %v518 = vsel %vm517, %v509, %v514
    %v519 = vmul.f32 %v485, %v508
    %v520 = vmul.f32 %v486, %v518
    %v521 = vperm.slane %v466, 0
    %v522 = vmul.f32 %v519, %v521
    %v523 = vmul.f32 %v520, %v521
    %v524 = vperm.slane %v467, 0
    %v525 = vadd.f32 %v522, %v524
    %v526 = vadd.f32 %v523, %v524
    %v527 = vpack.c.bf16 %v526, %v525
    %v528 = vld [vmem:[#allocation6] sm:$0xf]
    %v529 = vld [vmem:[#allocation6 + $0x4] sm:$0xf]
    %v530 = vld [vmem:[#allocation6 + $0x8] sm:$0xf]
    %v531 = vld [vmem:[#allocation6 + $0xc] sm:$0xf]
    %v532 = vld [vmem:[%s7] sm:$0x1]
    %v534 = vperm.slane %v532, 0
    %v540 = vunpack.c.l.b16 %v528
    %v541 = vunpack.c.l.b16 %v529
    %v542 = vunpack.c.l.b16 %v530
    %v543 = vunpack.c.l.b16 %v531
    %v544 = vpack.c.b16 %v541, %v540
    %v545 = vpack.c.b16 %v543, %v542
    %v549 = vsel %vm95, %v527, 0
    %551 = vmatpush.bf16.msra.mxu0 0
    %552 = vmatpush.bf16.msra.mxu0 0
    %553 = vmatpush.bf16.msra.mxu0 0
    %554 = vmatpush.bf16.msra.mxu0 0
    %555 = vmatpush.bf16.msra.mxu0 0
    %556 = vmatpush.bf16.msra.mxu0 0
    %557 = vmatpush.bf16.msra.mxu0 %v545
    %558 = vmatpush.bf16.msra.mxu0 %v544
    %559 = vmatmul.bf16.gmra.mxu0 %v549
    %v560 = vpop.f32.mrf.mxu0
    %v561 = vadd.f32 %v534, %v560
    %v562 = vpop.f32.mrf.mxu0
    %v563 = vadd.f32 %v534, %v562
    %564 = vdwg.mxu0
    %v565 = vmax.f32 %v561, 0.0
    %v566 = vmax.f32 %v563, 0.0
    %v567 = vpack.c.bf16 %v566, %v565
    %v568 = vld [vmem:[%s5] sm:$0xf]
    %v569 = vld [vmem:[%s5 + $0x4] sm:$0xf]
    %v570 = vld [vmem:[%s5 + $0x8] sm:$0xf]
    %v571 = vld [vmem:[%s5 + $0xc] sm:$0xf]
    %v572 = vld [vmem:[%s5 + $0x10] sm:$0xf]
    %v573 = vld [vmem:[%s5 + $0x14] sm:$0xf]
    %v574 = vld [vmem:[%s5 + $0x18] sm:$0xf]
    %v575 = vld [vmem:[%s5 + $0x1c] sm:$0xf]
    %v576 = vld [vmem:[#allocation8 + $0x4] sm:$0x1]
    %v577 = vperm.slane %v576, 0
    %v586 = vunpack.c.l.b16 %v568
    %v587 = vunpack.c.l.b16 %v569
    %v588 = vunpack.c.l.b16 %v570
    %v589 = vunpack.c.l.b16 %v571
    %v590 = vunpack.c.l.b16 %v572
    %v591 = vunpack.c.l.b16 %v573
    %v592 = vunpack.c.l.b16 %v574
    %v593 = vunpack.c.l.b16 %v575
    %v594 = vpack.c.b16 %v587, %v586
    %v595 = vpack.c.b16 %v589, %v588
    %v596 = vpack.c.b16 %v591, %v590
    %v597 = vpack.c.b16 %v593, %v592
    %vm602 = vcmask 523264
    %v604 = vsel %vm602, %v567, 0
    %606 = vmatpush.bf16.msra.mxu0 0
    %607 = vmatpush.bf16.msra.mxu0 0
    %608 = vmatpush.bf16.msra.mxu0 0
    %609 = vmatpush.bf16.msra.mxu0 0
    %610 = vmatpush.bf16.msra.mxu0 %v597
    %611 = vmatpush.bf16.msra.mxu0 %v596
    %612 = vmatpush.bf16.msra.mxu0 %v595
    %613 = vmatpush.bf16.msra.mxu0 %v594
    %614 = vmatmul.bf16.gmra.mxu0 %v604
    %v615 = vpop.f32.mrf.mxu0
    %v616 = vadd.f32 %v577, %v615
    %v617 = vpop.f32.mrf.mxu0
    %v618 = vadd.f32 %v577, %v617
    %619 = vdwg.mxu0
    %v620 = vld [vmem:[#allocation8 + $0x2] sm:$0x1]
    %v621 = vld [vmem:[#allocation8 + $0x3] sm:$0x1]
    %v622 = vadd.f32 %v525, %v616
    %v623 = vadd.f32 %v526, %v618
    %v624 = vsel %vm95, %v622, 0.0
    %625 = vadd.xlane.f32.xlu0 %v624
    %v626 = vpop.xlane.xlu0 %625
    %v627 = vsel %vm95, %v623, 0.0
    %628 = vadd.xlane.f32.xlu0 %v627
    %v629 = vpop.xlane.xlu0 %628
    %v630 = vmul.f32 %v626, %v482
    %v631 = vmul.f32 %v629, %v482
    %v632 = vsub.f32 %v622, %v630
    %v633 = vsub.f32 %v623, %v631
    %v634 = vmul.f32 %v632, %v632
    %v635 = vmul.f32 %v633, %v633
    %v636 = vsel %vm95, %v634, 0.0
    %637 = vadd.xlane.f32.xlu0 %v636
    %v638 = vpop.xlane.xlu0 %637
    %v639 = vsel %vm95, %v635, 0.0
    %640 = vadd.xlane.f32.xlu0 %v639
    %v641 = vpop.xlane.xlu0 %640
    %v642 = vmul.f32 %v638, %v482
    %v643 = vmul.f32 %v641, %v482
    %v644 = vadd.f32 %v642, 1e-05
    %v645 = vadd.f32 %v643, 1e-05
    %v646 = vrsqrt.pop %v644
    %v647 = vmul.f32 %v646, %v644
    %v648 = vmul.f32 %v647, %v646
    %v649 = vmul.f32 0.5, %v648
    %v650 = vsub.f32 1.5, %v649
    %v651 = vmul.f32 %v646, %v650
    %vm652 = vweird.f32 %v644
    %vm653 = vweird.f32 %v646
    %vm654 = vmor %vm652, %vm653
    %v655 = vsel %vm654, %v646, %v651
    %v656 = vrsqrt.pop %v645
    %v657 = vmul.f32 %v656, %v645
    %v658 = vmul.f32 %v657, %v656
    %v659 = vmul.f32 0.5, %v658
    %v660 = vsub.f32 1.5, %v659
    %v661 = vmul.f32 %v656, %v660
    %vm662 = vweird.f32 %v645
    %vm663 = vweird.f32 %v656
    %vm664 = vmor %vm662, %vm663
    %v665 = vsel %vm664, %v656, %v661
    %v666 = vmul.f32 %v632, %v655
    %v667 = vmul.f32 %v633, %v665
    %v668 = vperm.slane %v620, 0
    %v669 = vmul.f32 %v666, %v668
    %v670 = vmul.f32 %v667, %v668
    %v671 = vperm.slane %v621, 0
    %v672 = vadd.f32 %v669, %v671
    %v673 = vadd.f32 %v670, %v671
    %674 = vst.msk [vmem:[#allocation9] sm:$0xff] %vm95, %v672
    %675 = vst.msk [vmem:[#allocation9 + $0x8] sm:$0xff] %vm95, %v673
    // Predicated region
    $region46: #{tpu_custom_call.1} parent=1 // pred_check
      _
    $region47: #{tpu_custom_call.1} parent=1 // pred_check_branch
      %677 = sbr.rel (0) target = $region49
    $region48: #{tpu_custom_call.1} parent=1 // pred_region
      %679 = vsyncadd [#allocation5], 0
      %s680 = sshll.u32 [#allocation9], 4
      %s681 = int_to_ptr.vmem [resolvable:$true] %s680
      %s682 = sshll.u32 %s8, 4
      %s683 = int_to_ptr.hbm [resolvable:$true] %s682
      %688 = dma.vmem_to_hbm [thread:$0]  %s681, 256, %s683, [#allocation5], 128, 128, 8
    $region49: #{tpu_custom_call.1} parent=1 // pred_fallthru
      _
    // Predicated region
    $region50: #{tpu_custom_call.1} parent=1 // pred_check
      _
    $region51: #{tpu_custom_call.1} parent=1 // pred_check_branch
      %690 = sbr.rel (0) target = $region53
    $region52: #{tpu_custom_call.1} parent=1 // pred_region
      %692 = dma.done [#allocation5], 256
    $region53: #{tpu_custom_call.1} parent=1 // pred_fallthru
      _
    %693 = vsyncpa [#allocation4], 1
    %694 = vsyncpa [#allocation7], 1
    %695 = vsyncpa [#allocation5], 1

</llo_original>
